<compile_context>
chip_gen: v5e
topology: v5e:2x2
jax: 0.10.0
libtpu: 0.0.40
codegen_flags: <defaults>
</compile_context>

<pallas_src>
import jax
import jax.numpy as jnp
from jax.experimental import pallas as pl
from jax.experimental.pallas import tpu as pltpu


def decoder_rnn_kernel(
    x_ref,        # (B, I)        per-step input block
    h_init_ref,   # (2, B, H)     initial hidden (read only at t == 0)
    wab_ref,      # (I+2H, 8H)    bf16 block-diagonal: layer-0 [x|h0] gates | layer-1 h1 recurrent
    wbx_ref,      # (H, 4H+N1+N2) bf16 fused: layer-1 input gates | linear1[0] | linear3[0]
    wc_ref,       # (N1+N2, HEAD) bf16 fused head output matmul (lane-dense, zero-padded)
    ba_ref,       # (1, 8H)       f32 bias for the wab matmul (zeros on the recurrent half)
    bb_ref,       # (1, 4H+N1+N2) f32 bias for the wbx matmul
    bc_ref,       # (1, HEAD)     f32 bias for the head matmul
    states_ref,   # (B, H)        per-step GRU output (layer-1 new hidden)
    head_ref,     # (B, HEAD)     per-step packed head output [seq | stop | pad]
    h_final_ref,  # (2, B, H)     final hidden state (VMEM-resident; last write wins)
    lhs_s,        # (B, I+2H)     f32 scratch: persistent [x | h0 | h1] matmul LHS / hidden carry
):
    t = pl.program_id(0)
    I = x_ref.shape[1]
    H = h_final_ref.shape[2]
    G = 4 * H
    N1, N2 = 256, 128          # n_units_hidden1 / n_units_hidden2

    @pl.when(t == 0)
    def _():
        lhs_s[:, I:I + H] = h_init_ref[0]
        lhs_s[:, I + H:I + 2 * H] = h_init_ref[1]

    lhs_s[:, 0:I] = x_ref[...]
    lhs = lhs_s[...]                       # (B, I+2H) = [x | h0 | h1]
    h0 = lhs[:, I:I + H]
    h1 = lhs[:, I + H:I + 2 * H]

    def gru_update(pre, h):
        # pre: (B, 4H) = [r | z | n_input | n_hidden]   (PyTorch gate order r, z, n)
        r = jax.nn.sigmoid(pre[:, 0:H])
        z = jax.nn.sigmoid(pre[:, H:2 * H])
        n = jnp.tanh(pre[:, 2 * H:3 * H] + r * pre[:, 3 * H:4 * H])
        return (1.0 - z) * n + z * h

    # --- one block-diagonal matmul: layer-0 gates (cols 0:4H) + layer-1 recurrent gh1 (4H:8H) ---
    big0 = jnp.dot(lhs.astype(jnp.bfloat16), wab_ref[...],
                   preferred_element_type=jnp.float32) + ba_ref[...]
    h0_new = gru_update(big0[:, 0:G], h0)

    # --- everything consuming h0_new: layer-1 input gates | linear1[0] | linear3[0] ---
    big1 = jnp.dot(h0_new.astype(jnp.bfloat16), wbx_ref[...],
                   preferred_element_type=jnp.float32) + bb_ref[...]
    h1_new = gru_update(big1[:, 0:G] + big0[:, G:2 * G], h1)

    # Carry hidden state in scratch for the next grid step.
    lhs_s[:, I:I + H] = h0_new
    lhs_s[:, I + H:I + 2 * H] = h1_new

    # Per-step outputs; final-hidden output block is resident (constant index map), last write wins.
    states_ref[...] = h1_new
    h_final_ref[0, :, :] = h0_new
    h_final_ref[1, :, :] = h1_new

    # Heads: first N1 lanes = linear1 hidden (LeakyReLU(slope=1.0) == identity),
    # last N2 lanes = linear3 hidden (ReLU).  No concat: lane-masked ReLU on the contiguous slice.
    t_all = big1[:, G:G + N1 + N2]
    lane = jax.lax.broadcasted_iota(jnp.int32, t_all.shape, 1)
    t_act = jnp.where(lane >= N1, jnp.maximum(t_all, 0.0), t_all)
    head_ref[...] = jnp.dot(t_act.astype(jnp.bfloat16), wc_ref[...],
                            preferred_element_type=jnp.float32) + bc_ref[...]


def pack_params(p, input_size, hidden_size):
    """One-time repack of PyTorch-layout params into fused, pre-transposed kernel slabs."""
    H, I = hidden_size, input_size
    N1, N2 = 256, 128
    HEAD = ((I + 1 + 127) // 128) * 128   # lane-dense packed head output width

    def split3(a):
        return a[0:H], a[H:2 * H], a[2 * H:3 * H]

    wir, wiz, win = split3(p["wih0"])        # (H, I)
    whr, whz, whn = split3(p["whh0"])        # (H, H)
    w1hr, w1hz, w1hn = split3(p["whh1"])     # (H, H)

    # ---- slab AB (block-diagonal): rows [x | h0 | h1], cols [layer-0 gates 4H | layer-1 rec 4H]
    wab = jnp.zeros((I + 2 * H, 8 * H), jnp.float32)
    wab = (wab.at[:I, 0:H].set(wir.T)
              .at[:I, H:2 * H].set(wiz.T)
              .at[:I, 2 * H:3 * H].set(win.T)
              .at[I:I + H, 0:H].set(whr.T)
              .at[I:I + H, H:2 * H].set(whz.T)
              .at[I:I + H, 3 * H:4 * H].set(whn.T)
              .at[I + H:, 4 * H:5 * H].set(w1hr.T)
              .at[I + H:, 5 * H:6 * H].set(w1hz.T)
              .at[I + H:, 7 * H:8 * H].set(w1hn.T))
    bir, biz, bin_ = split3(p["bih0"])
    bhr, bhz, bhn = split3(p["bhh0"])
    ba = jnp.concatenate([bir + bhr, biz + bhz, bin_, bhn,
                          jnp.zeros((4 * H,), jnp.float32)])[None, :]    # (1, 8H)

    # ---- slab BX: everything consuming h0_new, (H, 4H + N1 + N2) ----
    w1ir, w1iz, w1in = split3(p["wih1"])     # (H, H)
    wbx = jnp.zeros((H, 4 * H + N1 + N2), jnp.float32)
    wbx = (wbx.at[:, 0:H].set(w1ir.T)
              .at[:, H:2 * H].set(w1iz.T)
              .at[:, 2 * H:3 * H].set(w1in.T)
              .at[:, 4 * H:4 * H + N1].set(p["w1a"].T)
              .at[:, 4 * H + N1:4 * H + N1 + N2].set(p["w3a"].T))
    b1ir, b1iz, b1in = split3(p["bih1"])
    b1hr, b1hz, b1hn = split3(p["bhh1"])
    bb = jnp.concatenate([b1ir + b1hr, b1iz + b1hz, b1in, b1hn,
                          p["b1a"], p["b3a"]])[None, :]                  # (1, 4H+N1+N2)

    # ---- slab C: second linear layers of both heads, padded lane-dense (N1+N2, HEAD) ----
    wc = jnp.zeros((N1 + N2, HEAD), jnp.float32)
    wc = wc.at[:N1, 0:I].set(p["w1b"].T).at[N1:, I:I + 1].set(p["w3b"].T)
    bc = jnp.zeros((HEAD,), jnp.float32)
    bc = bc.at[0:I].set(p["b1b"]).at[I:I + 1].set(p["b3b"])[None, :]     # (1, HEAD)

    return {
        "wab": wab.astype(jnp.bfloat16),   # bf16 halves weight DMA / VMEM residency
        "wbx": wbx.astype(jnp.bfloat16),
        "wc": wc.astype(jnp.bfloat16),
        "ba": ba, "bb": bb, "bc": bc,      # biases stay f32 (added to f32 accumulators)
    }


@jax.jit
def decoder_rnn_decode(xs, hidden, packed):
    """Run T decoder steps (one module-forward per step, hidden threaded inside the kernel).

    xs: (T, B, I)   hidden: (2, B, H)
    returns (states (T,B,H), hidden_final (2,B,H), output_seq (T,B,I), stop_sign (T,B,1)).
    """
    T, B, I = xs.shape
    H = hidden.shape[2]
    HEAD = packed["wc"].shape[1]

    c2 = lambda t: (0, 0)
    c3 = lambda t: (0, 0, 0)

    states, heads, h_final = pl.pallas_call(
        decoder_rnn_kernel,
        out_shape=(
            jax.ShapeDtypeStruct((T, B, H), jnp.float32),
            jax.ShapeDtypeStruct((T, B, HEAD), jnp.float32),
            jax.ShapeDtypeStruct((2, B, H), jnp.float32),
        ),
        grid_spec=pltpu.PrefetchScalarGridSpec(
            num_scalar_prefetch=0,
            grid=(T,),
            in_specs=[
                pl.BlockSpec((None, B, I), lambda t: (t, 0, 0)),   # per-step x block
                pl.BlockSpec((2, B, H), c3),                       # initial hidden (resident)
                pl.BlockSpec(packed["wab"].shape, c2),             # weights: constant index maps,
                pl.BlockSpec(packed["wbx"].shape, c2),             # DMA'd once, VMEM-resident
                pl.BlockSpec(packed["wc"].shape, c2),
                pl.BlockSpec(packed["ba"].shape, c2),
                pl.BlockSpec(packed["bb"].shape, c2),
                pl.BlockSpec(packed["bc"].shape, c2),
            ],
            out_specs=(
                pl.BlockSpec((None, B, H), lambda t: (t, 0, 0)),     # per-step GRU output
                pl.BlockSpec((None, B, HEAD), lambda t: (t, 0, 0)),  # per-step lane-dense head
                pl.BlockSpec((2, B, H), c3),                         # final hidden (resident)
            ),
            scratch_shapes=[pltpu.VMEM((B, I + 2 * H), jnp.float32)],
        ),
        compiler_params=pltpu.CompilerParams(
            dimension_semantics=("arbitrary",)),   # recurrent carry across grid steps
    )(xs, hidden, packed["wab"], packed["wbx"], packed["wc"],
      packed["ba"], packed["bb"], packed["bc"])

    output_seq = heads[:, :, :I]        # (T, B, I)
    stop_sign = heads[:, :, I:I + 1]    # (T, B, 1)
    return states, h_final, output_seq, stop_sign


def decoder_rnn_forward(inp, hidden, packed):
    """Single-step forward matching DecoderRNN.forward (eval mode).

    inp: (1, B, I)   hidden: (2, B, H) -> (output (1,B,H), hidden (2,B,H), output_seq (B,I), stop (B,1)).
    """
    states, h_final, seqs, stops = decoder_rnn_decode(inp, hidden, packed)
    return states, h_final, seqs[0], stops[0]


def init_params(key, input_size, hidden_size):
    """Deterministic PyTorch-style uniform(-1/sqrt(fan), 1/sqrt(fan)) init."""
    ks = iter(jax.random.split(key, 32))

    def unif(shape, fan):
        bound = 1.0 / jnp.sqrt(jnp.float32(fan))
        return jax.random.uniform(next(ks), shape, jnp.float32, -bound, bound)

    H, I = hidden_size, input_size
    p = {}
    # GRU layer 0: input I -> hidden H
    p["wih0"] = unif((3 * H, I), H)
    p["whh0"] = unif((3 * H, H), H)
    p["bih0"] = unif((3 * H,), H)
    p["bhh0"] = unif((3 * H,), H)
    # GRU layer 1: input H -> hidden H
    p["wih1"] = unif((3 * H, H), H)
    p["whh1"] = unif((3 * H, H), H)
    p["bih1"] = unif((3 * H,), H)
    p["bhh1"] = unif((3 * H,), H)
    # linear1: H -> 256 -> I
    p["w1a"] = unif((256, H), H)
    p["b1a"] = unif((256,), H)
    p["w1b"] = unif((I, 256), 256)
    p["b1b"] = unif((I,), 256)
    # linear3: H -> 128 -> 1
    p["w3a"] = unif((128, H), H)
    p["b3a"] = unif((128,), H)
    p["w3b"] = unif((1, 128), 128)
    p["b3b"] = unif((1,), 128)
    return p


def reference_forward(inp, hidden, p):
    """Pure-JAX f32 reference (unfused, PyTorch layout) for correctness checking."""
    x, h0, h1 = inp[0], hidden[0], hidden[1]
    H = h0.shape[1]

    def cell(x, h, wih, whh, bih, bhh):
        gi = x @ wih.T + bih
        gh = h @ whh.T + bhh
        r = jax.nn.sigmoid(gi[:, :H] + gh[:, :H])
        z = jax.nn.sigmoid(gi[:, H:2 * H] + gh[:, H:2 * H])
        n = jnp.tanh(gi[:, 2 * H:] + r * gh[:, 2 * H:])
        return (1.0 - z) * n + z * h

    h0n = cell(x, h0, p["wih0"], p["whh0"], p["bih0"], p["bhh0"])
    h1n = cell(h0n, h1, p["wih1"], p["whh1"], p["bih1"], p["bhh1"])
    t1 = h0n @ p["w1a"].T + p["b1a"]           # LeakyReLU(slope=1.0) == identity
    seq = t1 @ p["w1b"].T + p["b1b"]
    t3 = jnp.maximum(h0n @ p["w3a"].T + p["b3a"], 0.0)
    stop = t3 @ p["w3b"].T + p["b3b"]
    return h1n[None], jnp.stack([h0n, h1n]), seq, stop


if __name__ == "__main__":
    B, I, H, T = 8, 16, 32, 6
    key = jax.random.PRNGKey(0)
    k_par, k_x, k_h, k_xs = jax.random.split(key, 4)

    params = init_params(k_par, I, H)
    packed = pack_params(params, I, H)   # one-time weight layout / bf16 cast, off the per-step path

    TOL = dict(atol=5e-2, rtol=5e-2)     # loosened for bf16 weight slabs (f32 oracle)

    # ---- single-step check: matches DecoderRNN.forward exactly ----
    inp = jax.random.normal(k_x, (1, B, I), jnp.float32)       # (1, batch, input_size)
    hidden = jax.random.normal(k_h, (2, B, H), jnp.float32)    # (num_layers, batch, hidden)

    out = jax.block_until_ready(decoder_rnn_forward(inp, hidden, packed))
    ref = reference_forward(inp, hidden, params)
    for got, want in zip(out, ref):
        assert got.shape == want.shape, (got.shape, want.shape)
        err = float(jnp.max(jnp.abs(got - want)))
        assert jnp.allclose(got, want, **TOL), err

    # ---- multi-step decode check: loop of module forward with hidden threaded ----
    xs = jax.random.normal(k_xs, (T, B, I), jnp.float32)
    states, h_fin, seqs, stops = jax.block_until_ready(
        decoder_rnn_decode(xs, hidden, packed))

    h_ref = hidden
    for t in range(T):
        out_r, h_ref, seq_r, stop_r = reference_forward(xs[t:t + 1], h_ref, params)
        assert jnp.allclose(states[t], out_r[0], **TOL), t
        assert jnp.allclose(seqs[t], seq_r, **TOL), t
        assert jnp.allclose(stops[t], stop_r, **TOL), t
    assert jnp.allclose(h_fin, h_ref, **TOL)

    print("KERNEL_OK")
</pallas_src>

<mosaic_0001>
module attributes {stable_mosaic.version = 11 : i64} {
  func.func @decoder_rnn_kernel(%arg0: i32, %arg1: memref<1x8x16xf32, #tpu.memory_space<vmem>>, %arg2: memref<2x8x32xf32, #tpu.memory_space<vmem>>, %arg3: memref<80x256xbf16, #tpu.memory_space<vmem>>, %arg4: memref<32x512xbf16, #tpu.memory_space<vmem>>, %arg5: memref<384x128xbf16, #tpu.memory_space<vmem>>, %arg6: memref<1x256xf32, #tpu.memory_space<vmem>>, %arg7: memref<1x512xf32, #tpu.memory_space<vmem>>, %arg8: memref<1x128xf32, #tpu.memory_space<vmem>>, %arg9: memref<1x8x32xf32, #tpu.memory_space<vmem>>, %arg10: memref<1x8x128xf32, #tpu.memory_space<vmem>>, %arg11: memref<2x8x32xf32, #tpu.memory_space<vmem>>, %arg12: memref<8x80xf32, #tpu.memory_space<vmem>>) attributes {dimension_semantics = [#tpu.dimension_semantics<arbitrary>], iteration_bounds = array<i64: 1>, scalar_prefetch = 0 : i64, scratch_operands = 1 : i64, tpu.core_type = #tpu.core_type<tc>, window_params = [{transform_indices = @transform_0, window_bounds = array<i64: 1, 8, 16>}, {pipeline_mode = #tpu.pipeline_mode<synchronous>, transform_indices = @transform_1, window_bounds = array<i64: 2, 8, 32>}, {pipeline_mode = #tpu.pipeline_mode<synchronous>, transform_indices = @transform_2, window_bounds = array<i64: 80, 256>}, {pipeline_mode = #tpu.pipeline_mode<synchronous>, transform_indices = @transform_3, window_bounds = array<i64: 32, 512>}, {pipeline_mode = #tpu.pipeline_mode<synchronous>, transform_indices = @transform_4, window_bounds = array<i64: 384, 128>}, {pipeline_mode = #tpu.pipeline_mode<synchronous>, transform_indices = @transform_5, window_bounds = array<i64: 1, 256>}, {pipeline_mode = #tpu.pipeline_mode<synchronous>, transform_indices = @transform_6, window_bounds = array<i64: 1, 512>}, {pipeline_mode = #tpu.pipeline_mode<synchronous>, transform_indices = @transform_7, window_bounds = array<i64: 1, 128>}, {transform_indices = @transform_8, window_bounds = array<i64: 1, 8, 32>}, {transform_indices = @transform_9, window_bounds = array<i64: 1, 8, 128>}, {pipeline_mode = #tpu.pipeline_mode<synchronous>, transform_indices = @transform_10, window_bounds = array<i64: 2, 8, 32>}]} {
    %c0_i32 = arith.constant 0 : i32
    %0 = arith.cmpi eq, %arg0, %c0_i32 : i32
    %1 = arith.extui %0 : i1 to i32
    %c0_i32_0 = arith.constant 0 : i32
    %2 = arith.cmpi ne, %1, %c0_i32_0 : i32
    scf.if %2 {
      %c0_41 = arith.constant 0 : index
      %c0_42 = arith.constant 0 : index
      %c0_43 = arith.constant 0 : index
      %96 = vector.load %arg2[%c0_41, %c0_42, %c0_43] : memref<2x8x32xf32, #tpu.memory_space<vmem>>, vector<1x8x32xf32>
      %97 = vector.shape_cast %96 : vector<1x8x32xf32> to vector<8x32xf32>
      %c0_44 = arith.constant 0 : index
      %c16_45 = arith.constant 16 : index
      %98 = vector.load %arg12[%c0_44, %c16_45] : memref<8x80xf32, #tpu.memory_space<vmem>>, vector<8x32xf32>
      tpu.vector_store %arg12[%c0_44, %c16_45], %97 {strides = array<i32>} : memref<8x80xf32, #tpu.memory_space<vmem>>, vector<8x32xf32>,
      %c1_46 = arith.constant 1 : index
      %c0_47 = arith.constant 0 : index
      %c0_48 = arith.constant 0 : index
      %99 = vector.load %arg2[%c1_46, %c0_47, %c0_48] : memref<2x8x32xf32, #tpu.memory_space<vmem>>, vector<1x8x32xf32>
      %100 = vector.shape_cast %99 : vector<1x8x32xf32> to vector<8x32xf32>
      %c0_49 = arith.constant 0 : index
      %c48_50 = arith.constant 48 : index
      %101 = vector.load %arg12[%c0_49, %c48_50] : memref<8x80xf32, #tpu.memory_space<vmem>>, vector<8x32xf32>
      tpu.vector_store %arg12[%c0_49, %c48_50], %100 {strides = array<i32>} : memref<8x80xf32, #tpu.memory_space<vmem>>, vector<8x32xf32>,
    } else {
    }
    %c0 = arith.constant 0 : index
    %c0_1 = arith.constant 0 : index
    %c0_2 = arith.constant 0 : index
    %3 = vector.load %arg1[%c0, %c0_1, %c0_2] : memref<1x8x16xf32, #tpu.memory_space<vmem>>, vector<1x8x16xf32>
    %4 = vector.shape_cast %3 : vector<1x8x16xf32> to vector<8x16xf32>
    %c0_3 = arith.constant 0 : index
    %c0_4 = arith.constant 0 : index
    %5 = vector.load %arg12[%c0_3, %c0_4] : memref<8x80xf32, #tpu.memory_space<vmem>>, vector<8x16xf32>
    tpu.vector_store %arg12[%c0_3, %c0_4], %4 {strides = array<i32>} : memref<8x80xf32, #tpu.memory_space<vmem>>, vector<8x16xf32>,
    %c0_5 = arith.constant 0 : index
    %c0_6 = arith.constant 0 : index
    %6 = vector.load %arg12[%c0_5, %c0_6] : memref<8x80xf32, #tpu.memory_space<vmem>>, vector<8x80xf32>
    %7 = vector.extract_strided_slice %6 {offsets = [0, 16], sizes = [8, 32], strides = [1, 1]} : vector<8x80xf32> to vector<8x32xf32>
    %8 = vector.extract_strided_slice %6 {offsets = [0, 48], sizes = [8, 32], strides = [1, 1]} : vector<8x80xf32> to vector<8x32xf32>
    %9 = arith.truncf %6 : vector<8x80xf32> to vector<8x80xbf16>
    %c0_7 = arith.constant 0 : index
    %c0_8 = arith.constant 0 : index
    %10 = vector.load %arg3[%c0_7, %c0_8] : memref<80x256xbf16, #tpu.memory_space<vmem>>, vector<80x256xbf16>
    %cst = arith.constant dense<0.000000e+00> : vector<8x256xf32>
    %11 = tpu.matmul %9, %10, %cst {dimension_numbers = #tpu.dot_dimension_numbers<[1], [0], [0], [1], [0, 0, 1, 1], [], []>} : vector<8x80xbf16>, vector<80x256xbf16>, vector<8x256xf32> -> vector<8x256xf32>
    %c0_9 = arith.constant 0 : index
    %c0_10 = arith.constant 0 : index
    %12 = vector.load %arg6[%c0_9, %c0_10] : memref<1x256xf32, #tpu.memory_space<vmem>>, vector<1x256xf32>
    %13 = vector.broadcast %12 : vector<1x256xf32> to vector<8x256xf32>
    %14 = arith.addf %11, %13 : vector<8x256xf32>
    %15 = vector.extract_strided_slice %14 {offsets = [0, 0], sizes = [8, 128], strides = [1, 1]} : vector<8x256xf32> to vector<8x128xf32>
    %16 = vector.extract_strided_slice %15 {offsets = [0, 0], sizes = [8, 32], strides = [1, 1]} : vector<8x128xf32> to vector<8x32xf32>
    %17 = arith.negf %16 : vector<8x32xf32>
    %18 = math.exp %17 : vector<8x32xf32>
    %cst_11 = arith.constant 1.000000e+00 : f32
    %19 = vector.broadcast %cst_11 : f32 to vector<8x32xf32>
    %20 = arith.addf %19, %18 : vector<8x32xf32>
    %21 = arith.divf %19, %20 : vector<8x32xf32>
    %22 = vector.extract_strided_slice %15 {offsets = [0, 32], sizes = [8, 32], strides = [1, 1]} : vector<8x128xf32> to vector<8x32xf32>
    %23 = arith.negf %22 : vector<8x32xf32>
    %24 = math.exp %23 : vector<8x32xf32>
    %cst_12 = arith.constant 1.000000e+00 : f32
    %25 = vector.broadcast %cst_12 : f32 to vector<8x32xf32>
    %26 = arith.addf %25, %24 : vector<8x32xf32>
    %27 = arith.divf %25, %26 : vector<8x32xf32>
    %28 = vector.extract_strided_slice %15 {offsets = [0, 64], sizes = [8, 32], strides = [1, 1]} : vector<8x128xf32> to vector<8x32xf32>
    %29 = vector.extract_strided_slice %15 {offsets = [0, 96], sizes = [8, 32], strides = [1, 1]} : vector<8x128xf32> to vector<8x32xf32>
    %30 = arith.mulf %21, %29 : vector<8x32xf32>
    %31 = arith.addf %28, %30 : vector<8x32xf32>
    %32 = math.tanh %31 : vector<8x32xf32>
    %cst_13 = arith.constant 1.000000e+00 : f32
    %33 = vector.broadcast %cst_13 : f32 to vector<8x32xf32>
    %34 = arith.subf %33, %27 : vector<8x32xf32>
    %35 = arith.mulf %34, %32 : vector<8x32xf32>
    %36 = arith.mulf %27, %7 : vector<8x32xf32>
    %37 = arith.addf %35, %36 : vector<8x32xf32>
    %38 = arith.truncf %37 : vector<8x32xf32> to vector<8x32xbf16>
    %c0_14 = arith.constant 0 : index
    %c0_15 = arith.constant 0 : index
    %39 = vector.load %arg4[%c0_14, %c0_15] : memref<32x512xbf16, #tpu.memory_space<vmem>>, vector<32x512xbf16>
    %cst_16 = arith.constant dense<0.000000e+00> : vector<8x512xf32>
    %40 = tpu.matmul %38, %39, %cst_16 {dimension_numbers = #tpu.dot_dimension_numbers<[1], [0], [0], [1], [0, 0, 1, 1], [], []>} : vector<8x32xbf16>, vector<32x512xbf16>, vector<8x512xf32> -> vector<8x512xf32>
    %c0_17 = arith.constant 0 : index
    %c0_18 = arith.constant 0 : index
    %41 = vector.load %arg7[%c0_17, %c0_18] : memref<1x512xf32, #tpu.memory_space<vmem>>, vector<1x512xf32>
    %42 = vector.broadcast %41 : vector<1x512xf32> to vector<8x512xf32>
    %43 = arith.addf %40, %42 : vector<8x512xf32>
    %44 = vector.extract_strided_slice %43 {offsets = [0, 0], sizes = [8, 128], strides = [1, 1]} : vector<8x512xf32> to vector<8x128xf32>
    %45 = vector.extract_strided_slice %14 {offsets = [0, 128], sizes = [8, 128], strides = [1, 1]} : vector<8x256xf32> to vector<8x128xf32>
    %46 = arith.addf %44, %45 : vector<8x128xf32>
    %47 = vector.extract_strided_slice %46 {offsets = [0, 0], sizes = [8, 32], strides = [1, 1]} : vector<8x128xf32> to vector<8x32xf32>
    %48 = arith.negf %47 : vector<8x32xf32>
    %49 = math.exp %48 : vector<8x32xf32>
    %cst_19 = arith.constant 1.000000e+00 : f32
    %50 = vector.broadcast %cst_19 : f32 to vector<8x32xf32>
    %51 = arith.addf %50, %49 : vector<8x32xf32>
    %52 = arith.divf %50, %51 : vector<8x32xf32>
    %53 = vector.extract_strided_slice %46 {offsets = [0, 32], sizes = [8, 32], strides = [1, 1]} : vector<8x128xf32> to vector<8x32xf32>
    %54 = arith.negf %53 : vector<8x32xf32>
    %55 = math.exp %54 : vector<8x32xf32>
    %cst_20 = arith.constant 1.000000e+00 : f32
    %56 = vector.broadcast %cst_20 : f32 to vector<8x32xf32>
    %57 = arith.addf %56, %55 : vector<8x32xf32>
    %58 = arith.divf %56, %57 : vector<8x32xf32>
    %59 = vector.extract_strided_slice %46 {offsets = [0, 64], sizes = [8, 32], strides = [1, 1]} : vector<8x128xf32> to vector<8x32xf32>
    %60 = vector.extract_strided_slice %46 {offsets = [0, 96], sizes = [8, 32], strides = [1, 1]} : vector<8x128xf32> to vector<8x32xf32>
    %61 = arith.mulf %52, %60 : vector<8x32xf32>
    %62 = arith.addf %59, %61 : vector<8x32xf32>
    %63 = math.tanh %62 : vector<8x32xf32>
    %cst_21 = arith.constant 1.000000e+00 : f32
    %64 = vector.broadcast %cst_21 : f32 to vector<8x32xf32>
    %65 = arith.subf %64, %58 : vector<8x32xf32>
    %66 = arith.mulf %65, %63 : vector<8x32xf32>
    %67 = arith.mulf %58, %8 : vector<8x32xf32>
    %68 = arith.addf %66, %67 : vector<8x32xf32>
    %c0_22 = arith.constant 0 : index
    %c16 = arith.constant 16 : index
    %69 = vector.load %arg12[%c0_22, %c16] : memref<8x80xf32, #tpu.memory_space<vmem>>, vector<8x32xf32>
    tpu.vector_store %arg12[%c0_22, %c16], %37 {strides = array<i32>} : memref<8x80xf32, #tpu.memory_space<vmem>>, vector<8x32xf32>,
    %c0_23 = arith.constant 0 : index
    %c48 = arith.constant 48 : index
    %70 = vector.load %arg12[%c0_23, %c48] : memref<8x80xf32, #tpu.memory_space<vmem>>, vector<8x32xf32>
    tpu.vector_store %arg12[%c0_23, %c48], %68 {strides = array<i32>} : memref<8x80xf32, #tpu.memory_space<vmem>>, vector<8x32xf32>,
    %c0_24 = arith.constant 0 : index
    %c0_25 = arith.constant 0 : index
    %c0_26 = arith.constant 0 : index
    %71 = vector.load %arg9[%c0_24, %c0_25, %c0_26] : memref<1x8x32xf32, #tpu.memory_space<vmem>>, vector<1x8x32xf32>
    %72 = vector.shape_cast %71 : vector<1x8x32xf32> to vector<8x32xf32>
    %73 = vector.shape_cast %68 : vector<8x32xf32> to vector<1x8x32xf32>
    tpu.vector_store %arg9[%c0_24, %c0_25, %c0_26], %73 {strides = array<i32>} : memref<1x8x32xf32, #tpu.memory_space<vmem>>, vector<1x8x32xf32>,
    %c0_27 = arith.constant 0 : index
    %c0_28 = arith.constant 0 : index
    %c0_29 = arith.constant 0 : index
    %74 = vector.load %arg11[%c0_27, %c0_28, %c0_29] : memref<2x8x32xf32, #tpu.memory_space<vmem>>, vector<1x8x32xf32>
    %75 = vector.shape_cast %74 : vector<1x8x32xf32> to vector<8x32xf32>
    %76 = vector.shape_cast %37 : vector<8x32xf32> to vector<1x8x32xf32>
    tpu.vector_store %arg11[%c0_27, %c0_28, %c0_29], %76 {strides = array<i32>} : memref<2x8x32xf32, #tpu.memory_space<vmem>>, vector<1x8x32xf32>,
    %c1 = arith.constant 1 : index
    %c0_30 = arith.constant 0 : index
    %c0_31 = arith.constant 0 : index
    %77 = vector.load %arg11[%c1, %c0_30, %c0_31] : memref<2x8x32xf32, #tpu.memory_space<vmem>>, vector<1x8x32xf32>
    %78 = vector.shape_cast %77 : vector<1x8x32xf32> to vector<8x32xf32>
    %79 = vector.shape_cast %68 : vector<8x32xf32> to vector<1x8x32xf32>
    tpu.vector_store %arg11[%c1, %c0_30, %c0_31], %79 {strides = array<i32>} : memref<2x8x32xf32, #tpu.memory_space<vmem>>, vector<1x8x32xf32>,
    %80 = vector.extract_strided_slice %43 {offsets = [0, 128], sizes = [8, 384], strides = [1, 1]} : vector<8x512xf32> to vector<8x384xf32>
    %81 = tpu.iota {dimensions = array<i32: 1>} : vector<8x384xi32>
    %c256_i32 = arith.constant 256 : i32
    %82 = vector.broadcast %c256_i32 : i32 to vector<8x384xi32>
    %83 = arith.cmpi sge, %81, %82 : vector<8x384xi32>
    %cst_32 = arith.constant 0.000000e+00 : f32
    %84 = vector.broadcast %cst_32 : f32 to vector<8x384xf32>
    %85 = arith.maximumf %80, %84 : vector<8x384xf32>
    %86 = arith.select %83, %85, %80 : vector<8x384xi1>, vector<8x384xf32>
    %87 = arith.truncf %86 : vector<8x384xf32> to vector<8x384xbf16>
    %c0_33 = arith.constant 0 : index
    %c0_34 = arith.constant 0 : index
    %88 = vector.load %arg5[%c0_33, %c0_34] : memref<384x128xbf16, #tpu.memory_space<vmem>>, vector<384x128xbf16>
    %cst_35 = arith.constant dense<0.000000e+00> : vector<8x128xf32>
    %89 = tpu.matmul %87, %88, %cst_35 {dimension_numbers = #tpu.dot_dimension_numbers<[1], [0], [0], [1], [0, 0, 1, 1], [], []>} : vector<8x384xbf16>, vector<384x128xbf16>, vector<8x128xf32> -> vector<8x128xf32>
    %c0_36 = arith.constant 0 : index
    %c0_37 = arith.constant 0 : index
    %90 = vector.load %arg8[%c0_36, %c0_37] : memref<1x128xf32, #tpu.memory_space<vmem>>, vector<1x128xf32>
    %91 = vector.broadcast %90 : vector<1x128xf32> to vector<8x128xf32>
    %92 = arith.addf %89, %91 : vector<8x128xf32>
    %c0_38 = arith.constant 0 : index
    %c0_39 = arith.constant 0 : index
    %c0_40 = arith.constant 0 : index
    %93 = vector.load %arg10[%c0_38, %c0_39, %c0_40] : memref<1x8x128xf32, #tpu.memory_space<vmem>>, vector<1x8x128xf32>
    %94 = vector.shape_cast %93 : vector<1x8x128xf32> to vector<8x128xf32>
    %95 = vector.shape_cast %92 : vector<8x128xf32> to vector<1x8x128xf32>
    tpu.vector_store %arg10[%c0_38, %c0_39, %c0_40], %95 {strides = array<i32>} : memref<1x8x128xf32, #tpu.memory_space<vmem>>, vector<1x8x128xf32>,
    return
  }
  func.func @transform_0(%arg0: i32) -> (i32, i32, i32) {
    %c0_i32 = arith.constant 0 : i32
    %c0_i32_0 = arith.constant 0 : i32
    %c0_i32_1 = arith.constant 0 : i32
    return %arg0, %c0_i32, %c0_i32_0 : i32, i32, i32
  }
  func.func @transform_1(%arg0: i32) -> (i32, i32, i32) {
    %c0_i32 = arith.constant 0 : i32
    %c0_i32_0 = arith.constant 0 : i32
    %c0_i32_1 = arith.constant 0 : i32
    %c0_i32_2 = arith.constant 0 : i32
    return %c0_i32, %c0_i32_0, %c0_i32_1 : i32, i32, i32
  }
  func.func @transform_2(%arg0: i32) -> (i32, i32) {
    %c0_i32 = arith.constant 0 : i32
    %c0_i32_0 = arith.constant 0 : i32
    %c0_i32_1 = arith.constant 0 : i32
    return %c0_i32, %c0_i32_0 : i32, i32
  }
  func.func @transform_3(%arg0: i32) -> (i32, i32) {
    %c0_i32 = arith.constant 0 : i32
    %c0_i32_0 = arith.constant 0 : i32
    %c0_i32_1 = arith.constant 0 : i32
    return %c0_i32, %c0_i32_0 : i32, i32
  }
  func.func @transform_4(%arg0: i32) -> (i32, i32) {
    %c0_i32 = arith.constant 0 : i32
    %c0_i32_0 = arith.constant 0 : i32
    %c0_i32_1 = arith.constant 0 : i32
    return %c0_i32, %c0_i32_0 : i32, i32
  }
  func.func @transform_5(%arg0: i32) -> (i32, i32) {
    %c0_i32 = arith.constant 0 : i32
    %c0_i32_0 = arith.constant 0 : i32
    %c0_i32_1 = arith.constant 0 : i32
    return %c0_i32, %c0_i32_0 : i32, i32
  }
  func.func @transform_6(%arg0: i32) -> (i32, i32) {
    %c0_i32 = arith.constant 0 : i32
    %c0_i32_0 = arith.constant 0 : i32
    %c0_i32_1 = arith.constant 0 : i32
    return %c0_i32, %c0_i32_0 : i32, i32
  }
  func.func @transform_7(%arg0: i32) -> (i32, i32) {
    %c0_i32 = arith.constant 0 : i32
    %c0_i32_0 = arith.constant 0 : i32
    %c0_i32_1 = arith.constant 0 : i32
    return %c0_i32, %c0_i32_0 : i32, i32
  }
  func.func @transform_8(%arg0: i32) -> (i32, i32, i32) {
    %c0_i32 = arith.constant 0 : i32
    %c0_i32_0 = arith.constant 0 : i32
    %c0_i32_1 = arith.constant 0 : i32
    return %arg0, %c0_i32, %c0_i32_0 : i32, i32, i32
  }
  func.func @transform_9(%arg0: i32) -> (i32, i32, i32) {
    %c0_i32 = arith.constant 0 : i32
    %c0_i32_0 = arith.constant 0 : i32
    %c0_i32_1 = arith.constant 0 : i32
    return %arg0, %c0_i32, %c0_i32_0 : i32, i32, i32
  }
  func.func @transform_10(%arg0: i32) -> (i32, i32, i32) {
    %c0_i32 = arith.constant 0 : i32
    %c0_i32_0 = arith.constant 0 : i32
    %c0_i32_1 = arith.constant 0 : i32
    %c0_i32_2 = arith.constant 0 : i32
    return %c0_i32, %c0_i32_0, %c0_i32_1 : i32, i32, i32
  }
}

</mosaic_0001>

<llo_original>
// kernel: decoder_rnn_decode.1
$region0: #{decoder_rnn_decode.1}
  #allocation0 [shape = 'u32[]', space=smem, size = 0x4, offset = 0x4, fixed_abs, tag = 'smem constant byte address 0x4 - core index']
  #allocation1 [shape = 'u32[72,128]{1,0:T(1,128)}', space=vmem, size = 0x9000, scoped, tag = 'internal scratch']
  #allocation2 [shape = 'f32[8,80]{1,0:T(8,128)}', space=vmem, size = 0x1000, scoped, tag = 'scratch operand']
  %s0 = inlined_call_operand.hbm [shape: f32[1,8,16], index: 0, kind: input, shape index: {}]
  %s1 = inlined_call_operand.hbm [shape: f32[2,8,32], index: 1, kind: input, shape index: {}]
  %s2 = inlined_call_operand.hbm [shape: bf16[80,256], index: 2, kind: input, shape index: {}]
  %s3 = inlined_call_operand.hbm [shape: bf16[32,512], index: 3, kind: input, shape index: {}]
  %s4 = inlined_call_operand.hbm [shape: bf16[384,128], index: 4, kind: input, shape index: {}]
  %s5 = inlined_call_operand.hbm [shape: f32[1,256], index: 5, kind: input, shape index: {}]
  %s6 = inlined_call_operand.hbm [shape: f32[1,512], index: 6, kind: input, shape index: {}]
  %s7 = inlined_call_operand.vmem [shape: f32[1,128], index: 7, kind: input, shape index: {}]
  %s8 = inlined_call_operand.hbm [shape: f32[1,8,32], index: 8, kind: output, shape index: {0}]
  %s9 = inlined_call_operand.vmem [shape: f32[1,8,128], index: 9, kind: output, shape index: {1}]
  %s10 = inlined_call_operand.hbm [shape: f32[2,8,32], index: 10, kind: output, shape index: {2}]
  %11 = xla_tuple %s8, %s9, %s10
  %s12 = sld [smem:[#allocation0]]
  $region90: #{decoder_rnn_decode.1} parent=0
    _
  %s14 = ssub.s32 1, %s12
  %s15 = scalar_select 0, %s14, %s12
  $region1: #{decoder_rnn_decode.1} parent=0
    #allocation3 [shape = 'u8[4096]{0}', space=vmem, size = 0x1000, scoped, tag = 'input window, operand 0, single buffered']
    #allocation4 [shape = 's32[1]{0}', space=sflag, size = 0x4, scoped, tag = 'scoped memory for decoder_rnn_decode.1']
    #allocation5 [shape = 's32[1]{0}', space=sflag, size = 0x4, scoped, tag = 'scoped memory for decoder_rnn_decode.1']
    #allocation6 [shape = 'u8[8192]{0}', space=vmem, size = 0x2000, scoped, tag = 'input window, operand 1, single buffered']
    #allocation7 [shape = 's32[1]{0}', space=sflag, size = 0x4, scoped, tag = 'scoped memory for decoder_rnn_decode.1']
    #allocation8 [shape = 'u8[40960]{0}', space=vmem, size = 0xa000, scoped, tag = 'input window, operand 2, single buffered']
    #allocation9 [shape = 'u8[32768]{0}', space=vmem, size = 0x8000, scoped, tag = 'input window, operand 3, single buffered']
    #allocation10 [shape = 's32[1]{0}', space=sflag, size = 0x4, scoped, tag = 'scoped memory for decoder_rnn_decode.1']
    #allocation11 [shape = 'u8[98304]{0}', space=vmem, size = 0x18000, scoped, tag = 'input window, operand 4, single buffered']
    #allocation12 [shape = 'u8[1024]{0}', space=vmem, size = 0x400, scoped, tag = 'input window, operand 5, single buffered']
    #allocation13 [shape = 's32[1]{0}', space=sflag, size = 0x4, scoped, tag = 'scoped memory for decoder_rnn_decode.1']
    #allocation14 [shape = 'u8[2048]{0}', space=vmem, size = 0x800, scoped, tag = 'input window, operand 6, single buffered']
    #allocation15 [shape = 'u8[4096]{0}', space=vmem, size = 0x1000, scoped, tag = 'output window, operand 0, single buffered']
    #allocation16 [shape = 'u8[8192]{0}', space=vmem, size = 0x2000, scoped, tag = 'output window, operand 2, single buffered']
    #allocation17 [shape = 's32[1]{0}', space=sflag, size = 0x4, scoped, tag = 'scoped memory for decoder_rnn_decode.1']
    %16 = vsyncpa [#allocation4], 0
    %17 = vsyncpa [#allocation7], 0
    %18 = vsyncpa [#allocation10], 0
    %19 = vsyncpa [#allocation13], 0
    %20 = vsyncpa [#allocation5], 0
    %21 = vsyncpa [#allocation17], 0
    // Predicated region
    $region2: #{decoder_rnn_decode.1} parent=1 // pred_check
      _
    $region3: #{decoder_rnn_decode.1} parent=1 // pred_check_branch
      %23 = sbr.rel (0) target = $region5
    $region4: #{decoder_rnn_decode.1} parent=1 // pred_region
      %25 = vsyncadd [#allocation4], 0
      %s27 = sshll.u32 %s0, 4
      %s28 = int_to_ptr.hbm [resolvable:$true] %s27
      %s29 = sshll.u32 [#allocation3], 4
      %s30 = int_to_ptr.vmem [resolvable:$true] %s29
      %32 = dma.hbm_to_vmem [thread:$0]  %s28, 128, %s30, [#allocation4]
    $region5: #{decoder_rnn_decode.1} parent=1 // pred_fallthru
      _
    // Predicated region
    $region6: #{decoder_rnn_decode.1} parent=1 // pred_check
      _
    $region7: #{decoder_rnn_decode.1} parent=1 // pred_check_branch
      %34 = sbr.rel (0) target = $region9
    $region8: #{decoder_rnn_decode.1} parent=1 // pred_region
      %36 = vsyncadd [#allocation7], 0
      %s37 = sshll.u32 %s1, 4
      %s38 = int_to_ptr.hbm [resolvable:$true] %s37
      %s39 = sshll.u32 [#allocation6], 4
      %s40 = int_to_ptr.vmem [resolvable:$true] %s39
      %45 = dma.hbm_to_vmem [thread:$0]  %s38, 256, %s40, [#allocation7], 128, 128, 8
    $region9: #{decoder_rnn_decode.1} parent=1 // pred_fallthru
      _
    // Predicated region
    $region10: #{decoder_rnn_decode.1} parent=1 // pred_check
      _
    $region11: #{decoder_rnn_decode.1} parent=1 // pred_check_branch
      %47 = sbr.rel (0) target = $region13
    $region12: #{decoder_rnn_decode.1} parent=1 // pred_region
      %49 = vsyncadd [#allocation7], 0
      %s50 = sshll.u32 %s2, 4
      %s51 = int_to_ptr.hbm [resolvable:$true] %s50
      %s52 = sshll.u32 [#allocation8], 4
      %s53 = int_to_ptr.vmem [resolvable:$true] %s52
      %58 = dma.hbm_to_vmem [thread:$0]  %s51, 1280, %s53, [#allocation7], 128, 128, 8
    $region13: #{decoder_rnn_decode.1} parent=1 // pred_fallthru
      _
    // Predicated region
    $region14: #{decoder_rnn_decode.1} parent=1 // pred_check
      _
    $region15: #{decoder_rnn_decode.1} parent=1 // pred_check_branch
      %60 = sbr.rel (0) target = $region17
    $region16: #{decoder_rnn_decode.1} parent=1 // pred_region
      %62 = vsyncadd [#allocation10], 0
      %s63 = sshll.u32 %s3, 4
      %s64 = int_to_ptr.hbm [resolvable:$true] %s63
      %s65 = sshll.u32 [#allocation9], 4
      %s66 = int_to_ptr.vmem [resolvable:$true] %s65
      %71 = dma.hbm_to_vmem [thread:$0]  %s64, 1024, %s66, [#allocation10], 256, 256, 16
    $region17: #{decoder_rnn_decode.1} parent=1 // pred_fallthru
      _
    // Predicated region
    $region18: #{decoder_rnn_decode.1} parent=1 // pred_check
      _
    $region19: #{decoder_rnn_decode.1} parent=1 // pred_check_branch
      %73 = sbr.rel (0) target = $region21
    $region20: #{decoder_rnn_decode.1} parent=1 // pred_region
      %75 = vsyncadd [#allocation10], 0
      %s76 = sshll.u32 %s4, 4
      %s77 = int_to_ptr.hbm [resolvable:$true] %s76
      %s78 = sshll.u32 [#allocation11], 4
      %s79 = int_to_ptr.vmem [resolvable:$true] %s78
      %84 = dma.hbm_to_vmem [thread:$0]  %s77, 3072, %s79, [#allocation10], 64, 64, 4
    $region21: #{decoder_rnn_decode.1} parent=1 // pred_fallthru
      _
    // Predicated region
    $region22: #{decoder_rnn_decode.1} parent=1 // pred_check
      _
    $region23: #{decoder_rnn_decode.1} parent=1 // pred_check_branch
      %86 = sbr.rel (0) target = $region25
    $region24: #{decoder_rnn_decode.1} parent=1 // pred_region
      %88 = vsyncadd [#allocation13], 0
      %s90 = sshll.u32 %s5, 4
      %s91 = int_to_ptr.hbm [resolvable:$true] %s90
      %s92 = sshll.u32 [#allocation12], 4
      %s93 = int_to_ptr.vmem [resolvable:$true] %s92
      %95 = dma.hbm_to_vmem [thread:$0]  %s91, 32, %s93, [#allocation13]
    $region25: #{decoder_rnn_decode.1} parent=1 // pred_fallthru
      _
    // Predicated region
    $region26: #{decoder_rnn_decode.1} parent=1 // pred_check
      _
    $region27: #{decoder_rnn_decode.1} parent=1 // pred_check_branch
      %97 = sbr.rel (0) target = $region29
    $region28: #{decoder_rnn_decode.1} parent=1 // pred_region
      %99 = vsyncadd [#allocation13], 0
      %s101 = sshll.u32 %s6, 4
      %s102 = int_to_ptr.hbm [resolvable:$true] %s101
      %s103 = sshll.u32 [#allocation14], 4
      %s104 = int_to_ptr.vmem [resolvable:$true] %s103
      %106 = dma.hbm_to_vmem [thread:$0]  %s102, 64, %s104, [#allocation13]
    $region29: #{decoder_rnn_decode.1} parent=1 // pred_fallthru
      _
    // Predicated region
    $region30: #{decoder_rnn_decode.1} parent=1 // pred_check
      _
    $region31: #{decoder_rnn_decode.1} parent=1 // pred_check_branch
      %108 = sbr.rel (0) target = $region33
    $region32: #{decoder_rnn_decode.1} parent=1 // pred_region
      _
    $region33: #{decoder_rnn_decode.1} parent=1 // pred_fallthru
      _
    // Predicated region
    $region34: #{decoder_rnn_decode.1} parent=1 // pred_check
      _
    $region35: #{decoder_rnn_decode.1} parent=1 // pred_check_branch
      %110 = sbr.rel (0) target = $region37
    $region36: #{decoder_rnn_decode.1} parent=1 // pred_region
      %112 = dma.done [#allocation4], 128
    $region37: #{decoder_rnn_decode.1} parent=1 // pred_fallthru
      _
    // Predicated region
    $region38: #{decoder_rnn_decode.1} parent=1 // pred_check
      _
    $region39: #{decoder_rnn_decode.1} parent=1 // pred_check_branch
      %114 = sbr.rel (0) target = $region41
    $region40: #{decoder_rnn_decode.1} parent=1 // pred_region
      %116 = dma.done [#allocation7], 256
    $region41: #{decoder_rnn_decode.1} parent=1 // pred_fallthru
      _
    // Predicated region
    $region42: #{decoder_rnn_decode.1} parent=1 // pred_check
      _
    $region43: #{decoder_rnn_decode.1} parent=1 // pred_check_branch
      %118 = sbr.rel (0) target = $region45
    $region44: #{decoder_rnn_decode.1} parent=1 // pred_region
      %120 = dma.done [#allocation7], 1280
    $region45: #{decoder_rnn_decode.1} parent=1 // pred_fallthru
      _
    // Predicated region
    $region46: #{decoder_rnn_decode.1} parent=1 // pred_check
      _
    $region47: #{decoder_rnn_decode.1} parent=1 // pred_check_branch
      %122 = sbr.rel (0) target = $region49
    $region48: #{decoder_rnn_decode.1} parent=1 // pred_region
      %124 = dma.done [#allocation10], 1024
    $region49: #{decoder_rnn_decode.1} parent=1 // pred_fallthru
      _
    // Predicated region
    $region50: #{decoder_rnn_decode.1} parent=1 // pred_check
      _
    $region51: #{decoder_rnn_decode.1} parent=1 // pred_check_branch
      %126 = sbr.rel (0) target = $region53
    $region52: #{decoder_rnn_decode.1} parent=1 // pred_region
      %128 = dma.done [#allocation10], 3072
    $region53: #{decoder_rnn_decode.1} parent=1 // pred_fallthru
      _
    // Predicated region
    $region54: #{decoder_rnn_decode.1} parent=1 // pred_check
      _
    $region55: #{decoder_rnn_decode.1} parent=1 // pred_check_branch
      %130 = sbr.rel (0) target = $region57
    $region56: #{decoder_rnn_decode.1} parent=1 // pred_region
      %132 = dma.done [#allocation13], 32
    $region57: #{decoder_rnn_decode.1} parent=1 // pred_fallthru
      _
    // Predicated region
    $region58: #{decoder_rnn_decode.1} parent=1 // pred_check
      _
    $region59: #{decoder_rnn_decode.1} parent=1 // pred_check_branch
      %134 = sbr.rel (0) target = $region61
    $region60: #{decoder_rnn_decode.1} parent=1 // pred_region
      %136 = dma.done [#allocation13], 64
    $region61: #{decoder_rnn_decode.1} parent=1 // pred_fallthru
      _
    %p138 = scmp.eq.s32.totalorder 0, 0
    // Predicated region
    $region62: #{decoder_rnn_decode.1} parent=1 // pred_check
      %p139 = pneg %p138
    $region63: #{decoder_rnn_decode.1} parent=1 // pred_check_branch
      %141 = sbr.rel (%p139) target = $region65
    $region64: #{decoder_rnn_decode.1} parent=1 // pred_region
      %v142 = vld [vmem:[#allocation6] sm:$0xff]
      %144 = vrot.lane.b32.xlu0 %v142, 16
      %v145 = vpop.permute.xlu0 %144
      %vm147 = vcmask 392320
      %148 = vst.msk [vmem:[#allocation2] sm:$0xff] %vm147, %v145
      %s149 = scalar_lea.vmem [#allocation6], 8
      %v150 = vld [vmem:[%s149] sm:$0xff]
      %152 = vrot.lane.b32.xlu0 %v150, 48
      %v153 = vpop.permute.xlu0 %152
      %vm155 = vcmask 654720
      %156 = vst.msk [vmem:[#allocation2] sm:$0xff] %vm155, %v153
    $region65: #{decoder_rnn_decode.1} parent=1 // pred_fallthru
      _
    %v157 = vld [vmem:[#allocation3] sm:$0xff]
    %vm158 = vcmask 130048
    %159 = vst.msk [vmem:[#allocation2] sm:$0xff] %vm158, %v157
    %v160 = vld [vmem:[#allocation2] sm:$0xff]
    %v161 = vpack.c.bf16 %v160, %v160
    %v162 = vld [vmem:[#allocation8] sm:$0xff]
    %v163 = vld [vmem:[#allocation8 + $0x8] sm:$0xff]
    %v164 = vld [vmem:[#allocation8 + $0x10] sm:$0xff]
    %v165 = vld [vmem:[#allocation8 + $0x18] sm:$0xff]
    %v166 = vld [vmem:[#allocation8 + $0x20] sm:$0xff]
    %v167 = vld [vmem:[#allocation8 + $0x28] sm:$0xff]
    %v168 = vld [vmem:[#allocation8 + $0x30] sm:$0xff]
    %v169 = vld [vmem:[#allocation8 + $0x38] sm:$0xff]
    %v170 = vld [vmem:[#allocation8 + $0x40] sm:$0xff]
    %v171 = vld [vmem:[#allocation8 + $0x48] sm:$0xff]
    %v172 = vld [vmem:[#allocation12] sm:$0x3]
    %v174 = vperm.slane %v172, 0
    %v175 = vperm.slane %v172, 1
    %v188 = vunpack.c.l.b16 %v162
    %v189 = vunpack.c.h.b16 %v162
    %v190 = vunpack.c.l.b16 %v163
    %v191 = vunpack.c.h.b16 %v163
    %v192 = vunpack.c.l.b16 %v164
    %v193 = vunpack.c.h.b16 %v164
    %v194 = vunpack.c.l.b16 %v165
    %v195 = vunpack.c.h.b16 %v165
    %v196 = vunpack.c.l.b16 %v166
    %v197 = vunpack.c.h.b16 %v166
    %v198 = vunpack.c.l.b16 %v167
    %v199 = vunpack.c.h.b16 %v167
    %v200 = vunpack.c.l.b16 %v168
    %v201 = vunpack.c.h.b16 %v168
    %v202 = vunpack.c.l.b16 %v169
    %v203 = vunpack.c.h.b16 %v169
    %v204 = vunpack.c.l.b16 %v170
    %v205 = vunpack.c.h.b16 %v170
    %v206 = vunpack.c.l.b16 %v171
    %v207 = vunpack.c.h.b16 %v171
    %v208 = vpack.c.b16 %v190, %v188
    %v209 = vpack.c.b16 %v191, %v189
    %v210 = vpack.c.b16 %v194, %v192
    %v211 = vpack.c.b16 %v195, %v193
    %v212 = vpack.c.b16 %v198, %v196
    %v213 = vpack.c.b16 %v199, %v197
    %v214 = vpack.c.b16 %v202, %v200
    %v215 = vpack.c.b16 %v203, %v201
    %v216 = vpack.c.b16 %v206, %v204
    %v217 = vpack.c.b16 %v207, %v205
    %vm228 = vcmask 654336
    %v230 = vsel %vm228, %v161, 0
    %232 = vmatpush.bf16.msra.mxu0 0
    %233 = vmatpush.bf16.msra.mxu0 0
    %234 = vmatpush.bf16.msra.mxu0 0
    %235 = vmatpush.bf16.msra.mxu0 %v216
    %236 = vmatpush.bf16.msra.mxu0 %v214
    %237 = vmatpush.bf16.msra.mxu0 %v212
    %238 = vmatpush.bf16.msra.mxu0 %v210
    %239 = vmatpush.bf16.msra.mxu0 %v208
    %240 = vmatmul.bf16.gmra.mxu0 %v230
    %v241 = vpop.f32.mrf.mxu0
    %v242 = vadd.f32 %v174, %v241
    %v243 = vpop.f32.mrf.mxu0
    %244 = vdwg.mxu0
    %245 = vmatpush.bf16.msra.mxu0 0
    %246 = vmatpush.bf16.msra.mxu0 0
    %247 = vmatpush.bf16.msra.mxu0 0
    %248 = vmatpush.bf16.msra.mxu0 %v217
    %249 = vmatpush.bf16.msra.mxu0 %v215
    %250 = vmatpush.bf16.msra.mxu0 %v213
    %251 = vmatpush.bf16.msra.mxu0 %v211
    %252 = vmatpush.bf16.msra.mxu0 %v209
    %253 = vmatmul.bf16.gmra.mxu0 %v230
    %v254 = vpop.f32.mrf.mxu0
    %v255 = vadd.f32 %v175, %v254
    %v256 = vpop.f32.mrf.mxu0
    %257 = vdwg.mxu0
    %v258 = vxor.u32 %v242, 2147483648
    %v259 = vmul.f32 %v258, 1.442695
    %v260 = vpow.pop %v259
    %v261 = vadd.f32 %v260, 1.0
    %v262 = vrcp.pop %v261
    %v263 = vmul.f32 %v261, %v262
    %v264 = vsub.f32 1.0, %v263
    %v265 = vmul.f32 %v262, %v264
    %v266 = vadd.f32 %v262, %v265
    %vm267 = vweird.f32 %v261
    %vm268 = vweird.f32 %v262
    %vm269 = vmor %vm267, %vm268
    %v270 = vsel %vm269, %v262, %v266
    %v271 = vand.u32 2147483647, %v261
    %vm272 = vcmp.eq.f32.partialorder %v271, 8.507059e+37
    %v273 = vand.u32 %v261, 2147483648
    %v274 = vor.u32 1.1754944e-38, %v273
    %v275 = vsel %vm272, %v274, %v270
    %v276 = vmul.f32 1.0, %v275
    %278 = vrot.lane.b32.xlu0 %v242, 32
    %v279 = vpop.permute.xlu0 %278
    %v281 = vmul.f32 %v276, %v279
    %283 = vrot.lane.b32.xlu0 %v281, 64
    %v284 = vpop.permute.xlu0 %283
    %v286 = vadd.f32 %v242, %v284
    %v287 = vtanh.pop %v286
    %v288 = vsub.f32 1.0, %v276
    %290 = vrot.lane.b32.xlu0 %v287, 96
    %v291 = vpop.permute.xlu0 %290
    %v293 = vmul.f32 %v288, %v291
    %295 = vrot.lane.b32.xlu0 %v160, 16
    %v296 = vpop.permute.xlu0 %295
    %v298 = vmul.f32 %v276, %v296
    %v299 = vadd.f32 %v293, %v298
    %v300 = vpack.c.bf16 %v299, %v299
    %v301 = vld [vmem:[#allocation9] sm:$0xff]
    %v302 = vld [vmem:[#allocation9 + $0x8] sm:$0xff]
    %v303 = vld [vmem:[#allocation9 + $0x10] sm:$0xff]
    %v304 = vld [vmem:[#allocation9 + $0x18] sm:$0xff]
    %v305 = vld [vmem:[#allocation9 + $0x20] sm:$0xff]
    %v306 = vld [vmem:[#allocation9 + $0x28] sm:$0xff]
    %v307 = vld [vmem:[#allocation9 + $0x30] sm:$0xff]
    %v308 = vld [vmem:[#allocation9 + $0x38] sm:$0xff]
    %v309 = vld [vmem:[#allocation14] sm:$0xf]
    %v311 = vperm.slane %v309, 0
    %v312 = vperm.slane %v309, 1
    %v313 = vperm.slane %v309, 2
    %v314 = vperm.slane %v309, 3
    %320 = vrot.lane.b32.xlu0 %v300, 96
    %v321 = vpop.permute.xlu0 %320
    %v330 = vunpack.c.l.b16 %v301
    %v331 = vunpack.c.h.b16 %v301
    %v332 = vunpack.c.l.b16 %v302
    %v333 = vunpack.c.h.b16 %v302
    %v334 = vunpack.c.l.b16 %v303
    %v335 = vunpack.c.h.b16 %v303
    %v336 = vunpack.c.l.b16 %v304
    %v337 = vunpack.c.h.b16 %v304
    %v338 = vunpack.c.l.b16 %v305
    %v339 = vunpack.c.h.b16 %v305
    %v340 = vunpack.c.l.b16 %v306
    %v341 = vunpack.c.h.b16 %v306
    %v342 = vunpack.c.l.b16 %v307
    %v343 = vunpack.c.h.b16 %v307
    %v344 = vunpack.c.l.b16 %v308
    %v345 = vunpack.c.h.b16 %v308
    %v346 = vpack.c.b16 %v334, %v330
    %v347 = vpack.c.b16 %v335, %v331
    %v348 = vpack.c.b16 %v336, %v332
    %v349 = vpack.c.b16 %v337, %v333
    %v350 = vpack.c.b16 %v342, %v338
    %v351 = vpack.c.b16 %v343, %v339
    %v352 = vpack.c.b16 %v344, %v340
    %v353 = vpack.c.b16 %v345, %v341
    %vm362 = vcmask 261120
    %v364 = vsel %vm362, %v321, 0
    %366 = vmatpush.bf16.msra.mxu0 0
    %367 = vmatpush.bf16.msra.mxu0 0
    %368 = vmatpush.bf16.msra.mxu0 0
    %369 = vmatpush.bf16.msra.mxu0 0
    %370 = vmatpush.bf16.msra.mxu0 0
    %371 = vmatpush.bf16.msra.mxu0 0
    %372 = vmatpush.bf16.msra.mxu0 %v350
    %373 = vmatpush.bf16.msra.mxu0 %v346
    %374 = vmatmul.bf16.gmra.mxu0 %v364
    %v375 = vpop.f32.mrf.mxu0
    %v376 = vadd.f32 %v311, %v375
    %v377 = vpop.f32.mrf.mxu0
    %378 = vdwg.mxu0
    %379 = vmatpush.bf16.msra.mxu0 0
    %380 = vmatpush.bf16.msra.mxu0 0
    %381 = vmatpush.bf16.msra.mxu0 0
    %382 = vmatpush.bf16.msra.mxu0 0
    %383 = vmatpush.bf16.msra.mxu0 0
    %384 = vmatpush.bf16.msra.mxu0 0
    %385 = vmatpush.bf16.msra.mxu0 %v351
    %386 = vmatpush.bf16.msra.mxu0 %v347
    %387 = vmatmul.bf16.gmra.mxu0 %v364
    %v388 = vpop.f32.mrf.mxu0
    %v389 = vadd.f32 %v312, %v388
    %v390 = vpop.f32.mrf.mxu0
    %391 = vdwg.mxu0
    %392 = vmatpush.bf16.msra.mxu0 0
    %393 = vmatpush.bf16.msra.mxu0 0
    %394 = vmatpush.bf16.msra.mxu0 0
    %395 = vmatpush.bf16.msra.mxu0 0
    %396 = vmatpush.bf16.msra.mxu0 0
    %397 = vmatpush.bf16.msra.mxu0 0
    %398 = vmatpush.bf16.msra.mxu0 %v352
    %399 = vmatpush.bf16.msra.mxu0 %v348
    %400 = vmatmul.bf16.gmra.mxu0 %v364
    %v401 = vpop.f32.mrf.mxu0
    %v402 = vadd.f32 %v313, %v401
    %v403 = vpop.f32.mrf.mxu0
    %404 = vdwg.mxu0
    %405 = vmatpush.bf16.msra.mxu0 0
    %406 = vmatpush.bf16.msra.mxu0 0
    %407 = vmatpush.bf16.msra.mxu0 0
    %408 = vmatpush.bf16.msra.mxu0 0
    %409 = vmatpush.bf16.msra.mxu0 0
    %410 = vmatpush.bf16.msra.mxu0 0
    %411 = vmatpush.bf16.msra.mxu0 %v353
    %412 = vmatpush.bf16.msra.mxu0 %v349
    %413 = vmatmul.bf16.gmra.mxu0 %v364
    %v414 = vpop.f32.mrf.mxu0
    %v415 = vadd.f32 %v314, %v414
    %v416 = vpop.f32.mrf.mxu0
    %417 = vdwg.mxu0
    %v418 = vadd.f32 %v376, %v255
    %v419 = vxor.u32 %v418, 2147483648
    %v420 = vmul.f32 %v419, 1.442695
    %v421 = vpow.pop %v420
    %v422 = vadd.f32 %v421, 1.0
    %v423 = vrcp.pop %v422
    %v424 = vmul.f32 %v422, %v423
    %v425 = vsub.f32 1.0, %v424
    %v426 = vmul.f32 %v423, %v425
    %v427 = vadd.f32 %v423, %v426
    %vm428 = vweird.f32 %v422
    %vm429 = vweird.f32 %v423
    %vm430 = vmor %vm428, %vm429
    %v431 = vsel %vm430, %v423, %v427
    %v432 = vand.u32 2147483647, %v422
    %vm433 = vcmp.eq.f32.partialorder %v432, 8.507059e+37
    %v434 = vand.u32 %v422, 2147483648
    %v435 = vor.u32 1.1754944e-38, %v434
    %v436 = vsel %vm433, %v435, %v431
    %v437 = vmul.f32 1.0, %v436
    %439 = vrot.lane.b32.xlu0 %v418, 32
    %v440 = vpop.permute.xlu0 %439
    %v442 = vmul.f32 %v437, %v440
    %444 = vrot.lane.b32.xlu0 %v442, 64
    %v445 = vpop.permute.xlu0 %444
    %v447 = vadd.f32 %v418, %v445
    %v448 = vtanh.pop %v447
    %v449 = vsub.f32 1.0, %v437
    %451 = vrot.lane.b32.xlu0 %v448, 96
    %v452 = vpop.permute.xlu0 %451
    %v454 = vmul.f32 %v449, %v452
    %455 = vrot.lane.b32.xlu0 %v160, 112
    %v456 = vpop.permute.xlu0 %455
    %v458 = vmul.f32 %v437, %v456
    %v459 = vadd.f32 %v454, %v458
    %461 = vrot.lane.b32.xlu0 %v299, 112
    %v462 = vpop.permute.xlu0 %461
    %vm464 = vcmask 392320
    %465 = vst.msk [vmem:[#allocation2] sm:$0xff] %vm464, %v462
    %467 = vrot.lane.b32.xlu0 %v459, 16
    %v468 = vpop.permute.xlu0 %467
    %vm470 = vcmask 654720
    %471 = vst.msk [vmem:[#allocation2] sm:$0xff] %vm470, %v468
    %472 = vrot.lane.b32.xlu0 %v459, 96
    %v473 = vpop.permute.xlu0 %472
    %475 = vst.msk [vmem:[#allocation15] sm:$0xff] %vm362, %v473
    %476 = vrot.lane.b32.xlu0 %v299, 96
    %v477 = vpop.permute.xlu0 %476
    %479 = vst.msk [vmem:[#allocation16] sm:$0xff] %vm362, %v477
    %s480 = scalar_lea.vmem [#allocation16], 8
    %481 = vst.msk [vmem:[%s480] sm:$0xff] %vm362, %v473
    %v482 = vlaneseq
    %v483 = vand.u32 %v482, 127
    %v484 = vadd.s32 %v483, 128
    %v485 = vadd.s32 %v483, 256
    %vm486 = vcmp.ge.s32.totalorder %v483, 256
    %vm487 = vcmp.ge.s32.totalorder %v484, 256
    %vm488 = vcmp.ge.s32.totalorder %v485, 256
    %v489 = vmax.f32 %v389, 0.0
    %v490 = vmax.f32 %v402, 0.0
    %v491 = vmax.f32 %v415, 0.0
    %v492 = vsel %vm486, %v489, %v389
    %v493 = vsel %vm487, %v490, %v402
    %v494 = vsel %vm488, %v491, %v415
    %v495 = vpack.c.bf16 %v492, %v492
    %v496 = vpack.c.bf16 %v493, %v493
    %v497 = vpack.c.bf16 %v494, %v494
    %v498 = vld [vmem:[#allocation11] sm:$0xf]
    %v499 = vld [vmem:[#allocation11 + $0x4] sm:$0xf]
    %v500 = vld [vmem:[#allocation11 + $0x8] sm:$0xf]
    %v501 = vld [vmem:[#allocation11 + $0xc] sm:$0xf]
    %v502 = vld [vmem:[#allocation11 + $0x10] sm:$0xf]
    %v503 = vld [vmem:[#allocation11 + $0x14] sm:$0xf]
    %v504 = vld [vmem:[#allocation11 + $0x18] sm:$0xf]
    %v505 = vld [vmem:[#allocation11 + $0x1c] sm:$0xf]
    %v506 = vld [vmem:[#allocation11 + $0x20] sm:$0xf]
    %v507 = vld [vmem:[#allocation11 + $0x24] sm:$0xf]
    %v508 = vld [vmem:[#allocation11 + $0x28] sm:$0xf]
    %v509 = vld [vmem:[#allocation11 + $0x2c] sm:$0xf]
    %v510 = vld [vmem:[#allocation11 + $0x30] sm:$0xf]
    %v511 = vld [vmem:[#allocation11 + $0x34] sm:$0xf]
    %v512 = vld [vmem:[#allocation11 + $0x38] sm:$0xf]
    %v513 = vld [vmem:[#allocation11 + $0x3c] sm:$0xf]
    %v514 = vld [vmem:[#allocation11 + $0x40] sm:$0xf]
    %v515 = vld [vmem:[#allocation11 + $0x44] sm:$0xf]
    %v516 = vld [vmem:[#allocation11 + $0x48] sm:$0xf]
    %v517 = vld [vmem:[#allocation11 + $0x4c] sm:$0xf]
    %v518 = vld [vmem:[#allocation11 + $0x50] sm:$0xf]
    %v519 = vld [vmem:[#allocation11 + $0x54] sm:$0xf]
    %v520 = vld [vmem:[#allocation11 + $0x58] sm:$0xf]
    %v521 = vld [vmem:[#allocation11 + $0x5c] sm:$0xf]
    %v522 = vld [vmem:[#allocation11 + $0x60] sm:$0xf]
    %v523 = vld [vmem:[#allocation11 + $0x64] sm:$0xf]
    %v524 = vld [vmem:[#allocation11 + $0x68] sm:$0xf]
    %v525 = vld [vmem:[#allocation11 + $0x6c] sm:$0xf]
    %v526 = vld [vmem:[#allocation11 + $0x70] sm:$0xf]
    %v527 = vld [vmem:[#allocation11 + $0x74] sm:$0xf]
    %v528 = vld [vmem:[#allocation11 + $0x78] sm:$0xf]
    %v529 = vld [vmem:[#allocation11 + $0x7c] sm:$0xf]
    %v530 = vld [vmem:[#allocation11 + $0x80] sm:$0xf]
    %v531 = vld [vmem:[#allocation11 + $0x84] sm:$0xf]
    %v532 = vld [vmem:[#allocation11 + $0x88] sm:$0xf]
    %v533 = vld [vmem:[#allocation11 + $0x8c] sm:$0xf]
    %v534 = vld [vmem:[#allocation11 + $0x90] sm:$0xf]
    %v535 = vld [vmem:[#allocation11 + $0x94] sm:$0xf]
    %v536 = vld [vmem:[#allocation11 + $0x98] sm:$0xf]
    %v537 = vld [vmem:[#allocation11 + $0x9c] sm:$0xf]
    %v538 = vld [vmem:[#allocation11 + $0xa0] sm:$0xf]
    %v539 = vld [vmem:[#allocation11 + $0xa4] sm:$0xf]
    %v540 = vld [vmem:[#allocation11 + $0xa8] sm:$0xf]
    %v541 = vld [vmem:[#allocation11 + $0xac] sm:$0xf]
    %v542 = vld [vmem:[#allocation11 + $0xb0] sm:$0xf]
    %v543 = vld [vmem:[#allocation11 + $0xb4] sm:$0xf]
    %v544 = vld [vmem:[#allocation11 + $0xb8] sm:$0xf]
    %v545 = vld [vmem:[#allocation11 + $0xbc] sm:$0xf]
    %v546 = vld [vmem:[%s7] sm:$0x1]
    %v548 = vperm.slane %v546, 0
    %v598 = vunpack.c.l.b16 %v498
    %v599 = vunpack.c.l.b16 %v499
    %v600 = vunpack.c.l.b16 %v500
    %v601 = vunpack.c.l.b16 %v501
    %v602 = vunpack.c.l.b16 %v502
    %v603 = vunpack.c.l.b16 %v503
    %v604 = vunpack.c.l.b16 %v504
    %v605 = vunpack.c.l.b16 %v505
    %v606 = vunpack.c.l.b16 %v506
    %v607 = vunpack.c.l.b16 %v507
    %v608 = vunpack.c.l.b16 %v508
    %v609 = vunpack.c.l.b16 %v509
    %v610 = vunpack.c.l.b16 %v510
    %v611 = vunpack.c.l.b16 %v511
    %v612 = vunpack.c.l.b16 %v512
    %v613 = vunpack.c.l.b16 %v513
    %v614 = vunpack.c.l.b16 %v514
    %v615 = vunpack.c.l.b16 %v515
    %v616 = vunpack.c.l.b16 %v516
    %v617 = vunpack.c.l.b16 %v517
    %v618 = vunpack.c.l.b16 %v518
    %v619 = vunpack.c.l.b16 %v519
    %v620 = vunpack.c.l.b16 %v520
    %v621 = vunpack.c.l.b16 %v521
    %v622 = vunpack.c.l.b16 %v522
    %v623 = vunpack.c.l.b16 %v523
    %v624 = vunpack.c.l.b16 %v524
    %v625 = vunpack.c.l.b16 %v525
    %v626 = vunpack.c.l.b16 %v526
    %v627 = vunpack.c.l.b16 %v527
    %v628 = vunpack.c.l.b16 %v528
    %v629 = vunpack.c.l.b16 %v529
    %v630 = vunpack.c.l.b16 %v530
    %v631 = vunpack.c.l.b16 %v531
    %v632 = vunpack.c.l.b16 %v532
    %v633 = vunpack.c.l.b16 %v533
    %v634 = vunpack.c.l.b16 %v534
    %v635 = vunpack.c.l.b16 %v535
    %v636 = vunpack.c.l.b16 %v536
    %v637 = vunpack.c.l.b16 %v537
    %v638 = vunpack.c.l.b16 %v538
    %v639 = vunpack.c.l.b16 %v539
    %v640 = vunpack.c.l.b16 %v540
    %v641 = vunpack.c.l.b16 %v541
    %v642 = vunpack.c.l.b16 %v542
    %v643 = vunpack.c.l.b16 %v543
    %v644 = vunpack.c.l.b16 %v544
    %v645 = vunpack.c.l.b16 %v545
    %v646 = vpack.c.b16 %v599, %v598
    %v647 = vpack.c.b16 %v601, %v600
    %v648 = vpack.c.b16 %v603, %v602
    %v649 = vpack.c.b16 %v605, %v604
    %v650 = vpack.c.b16 %v607, %v606
    %v651 = vpack.c.b16 %v609, %v608
    %v652 = vpack.c.b16 %v611, %v610
    %v653 = vpack.c.b16 %v613, %v612
    %v654 = vpack.c.b16 %v615, %v614
    %v655 = vpack.c.b16 %v617, %v616
    %v656 = vpack.c.b16 %v619, %v618
    %v657 = vpack.c.b16 %v621, %v620
    %v658 = vpack.c.b16 %v623, %v622
    %v659 = vpack.c.b16 %v625, %v624
    %v660 = vpack.c.b16 %v627, %v626
    %v661 = vpack.c.b16 %v629, %v628
    %v662 = vpack.c.b16 %v631, %v630
    %v663 = vpack.c.b16 %v633, %v632
    %v664 = vpack.c.b16 %v635, %v634
    %v665 = vpack.c.b16 %v637, %v636
    %v666 = vpack.c.b16 %v639, %v638
    %v667 = vpack.c.b16 %v641, %v640
    %v668 = vpack.c.b16 %v643, %v642
    %v669 = vpack.c.b16 %v645, %v644
    %694 = vmatpush.bf16.msra.mxu0 %v653
    %695 = vmatpush.bf16.msra.mxu0 %v652
    %696 = vmatpush.bf16.msra.mxu0 %v651
    %697 = vmatpush.bf16.msra.mxu0 %v650
    %698 = vmatpush.bf16.msra.mxu0 %v649
    %699 = vmatpush.bf16.msra.mxu0 %v648
    %700 = vmatpush.bf16.msra.mxu0 %v647
    %701 = vmatpush.bf16.msra.mxu0 %v646
    %702 = vmatmul.bf16.gmra.mxu0 %v495
    %v703 = vpop.f32.mrf.mxu0
    %v704 = vadd.f32 %v548, %v703
    %v705 = vpop.f32.mrf.mxu0
    %706 = vdwg.mxu0
    %707 = vmatpush.bf16.msra.mxu0 %v661
    %708 = vmatpush.bf16.msra.mxu0 %v660
    %709 = vmatpush.bf16.msra.mxu0 %v659
    %710 = vmatpush.bf16.msra.mxu0 %v658
    %711 = vmatpush.bf16.msra.mxu0 %v657
    %712 = vmatpush.bf16.msra.mxu0 %v656
    %713 = vmatpush.bf16.msra.mxu0 %v655
    %714 = vmatpush.bf16.msra.mxu0 %v654
    %715 = vmatmul.bf16.gmra.mxu0 %v496
    %v716 = vpop.f32.mrf.mxu0
    %v717 = vadd.f32 %v704, %v716
    %v718 = vpop.f32.mrf.mxu0
    %719 = vdwg.mxu0
    %720 = vmatpush.bf16.msra.mxu0 %v669
    %721 = vmatpush.bf16.msra.mxu0 %v668
    %722 = vmatpush.bf16.msra.mxu0 %v667
    %723 = vmatpush.bf16.msra.mxu0 %v666
    %724 = vmatpush.bf16.msra.mxu0 %v665
    %725 = vmatpush.bf16.msra.mxu0 %v664
    %726 = vmatpush.bf16.msra.mxu0 %v663
    %727 = vmatpush.bf16.msra.mxu0 %v662
    %728 = vmatmul.bf16.gmra.mxu0 %v497
    %v729 = vpop.f32.mrf.mxu0
    %v730 = vadd.f32 %v717, %v729
    %v731 = vpop.f32.mrf.mxu0
    %732 = vdwg.mxu0
    %733 = vst [vmem:[%s9] sm:$0xff] %v730
    // Predicated region
    $region66: #{decoder_rnn_decode.1} parent=1 // pred_check
      _
    $region67: #{decoder_rnn_decode.1} parent=1 // pred_check_branch
      %735 = sbr.rel (0) target = $region69
    $region68: #{decoder_rnn_decode.1} parent=1 // pred_region
      %737 = vsyncadd [#allocation5], 0
      %s739 = sshll.u32 [#allocation15], 4
      %s740 = int_to_ptr.vmem [resolvable:$true] %s739
      %s741 = sshll.u32 %s8, 4
      %s742 = int_to_ptr.hbm [resolvable:$true] %s741
      %744 = dma.vmem_to_hbm [thread:$0]  %s740, 128, %s742, [#allocation5]
    $region69: #{decoder_rnn_decode.1} parent=1 // pred_fallthru
      _
    // Predicated region
    $region70: #{decoder_rnn_decode.1} parent=1 // pred_check
      _
    $region71: #{decoder_rnn_decode.1} parent=1 // pred_check_branch
      %746 = sbr.rel (0) target = $region73
    $region72: #{decoder_rnn_decode.1} parent=1 // pred_region
      _
    $region73: #{decoder_rnn_decode.1} parent=1 // pred_fallthru
      _
    // Predicated region
    $region74: #{decoder_rnn_decode.1} parent=1 // pred_check
      _
    $region75: #{decoder_rnn_decode.1} parent=1 // pred_check_branch
      %748 = sbr.rel (0) target = $region77
    $region76: #{decoder_rnn_decode.1} parent=1 // pred_region
      %750 = vsyncadd [#allocation17], 0
      %s751 = sshll.u32 [#allocation16], 4
      %s752 = int_to_ptr.vmem [resolvable:$true] %s751
      %s753 = sshll.u32 %s10, 4
      %s754 = int_to_ptr.hbm [resolvable:$true] %s753
      %759 = dma.vmem_to_hbm [thread:$0]  %s752, 256, %s754, [#allocation17], 128, 128, 8
    $region77: #{decoder_rnn_decode.1} parent=1 // pred_fallthru
      _
    // Predicated region
    $region78: #{decoder_rnn_decode.1} parent=1 // pred_check
      _
    $region79: #{decoder_rnn_decode.1} parent=1 // pred_check_branch
      %761 = sbr.rel (0) target = $region81
    $region80: #{decoder_rnn_decode.1} parent=1 // pred_region
      %763 = dma.done [#allocation5], 128
    $region81: #{decoder_rnn_decode.1} parent=1 // pred_fallthru
      _
    // Predicated region
    $region82: #{decoder_rnn_decode.1} parent=1 // pred_check
      _
    $region83: #{decoder_rnn_decode.1} parent=1 // pred_check_branch
      %765 = sbr.rel (0) target = $region85
    $region84: #{decoder_rnn_decode.1} parent=1 // pred_region
      _
    $region85: #{decoder_rnn_decode.1} parent=1 // pred_fallthru
      _
    // Predicated region
    $region86: #{decoder_rnn_decode.1} parent=1 // pred_check
      _
    $region87: #{decoder_rnn_decode.1} parent=1 // pred_check_branch
      %767 = sbr.rel (0) target = $region89
    $region88: #{decoder_rnn_decode.1} parent=1 // pred_region
      %769 = dma.done [#allocation17], 256
    $region89: #{decoder_rnn_decode.1} parent=1 // pred_fallthru
      _
    %770 = vsyncpa [#allocation4], 1
    %771 = vsyncpa [#allocation7], 1
    %772 = vsyncpa [#allocation10], 1
    %773 = vsyncpa [#allocation13], 1
    %774 = vsyncpa [#allocation5], 1
    %775 = vsyncpa [#allocation17], 1

</llo_original>
